<compile_context>
chip_gen: v6e
topology: v6e:2x2x1
jax: 0.10.0
libtpu: 0.0.40
codegen_flags: <defaults>
</compile_context>

<pallas_src>
import functools
import math

import jax
import jax.numpy as jnp
from jax.experimental import pallas as pl
from jax.experimental.pallas import tpu as pltpu


def _round_up(a: int, m: int) -> int:
    return (a + m - 1) // m * m


def _simloss_kernel(x_ref, y_ref, out_ref, *,
                    epsilon, r, log_r, r_is_zero, use_exp_for_w,
                    num_classes, batch, block_b, has_partial):
    i = pl.program_id(0)

    x = x_ref[...].astype(jnp.float32)           # (TB, C): cast after DMA (bf16 ok)
    y = y_ref[...]                               # (TB, 1) int32 labels
    TB, C = x.shape

    # Analytic W row:  W[y_b, c] = r ** |c - y_b|   (no gather, no MXU).
    cls = jax.lax.broadcasted_iota(jnp.int32, (TB, C), 1)
    dist = jnp.abs(cls - y)                      # (TB, C) int32
    if r_is_zero:
        w = (dist == 0).astype(jnp.float32)      # r == 0 -> identity rows
    elif use_exp_for_w:
        w = jnp.exp(dist.astype(jnp.float32) * log_r)      # r ** dist via EUP
    else:
        # Exact VALU square-and-multiply over the bits of dist (avoids the
        # single EUP slot) — use on v5e / v7x if the EUP saturates.
        nbits = max(1, (num_classes - 1).bit_length())
        w = jnp.ones((TB, C), jnp.float32)
        for k in range(nbits):
            bit = (dist >> k) & 1
            w = w * jnp.where(bit == 1,
                              jnp.float32(r ** (1 << k)), jnp.float32(1.0))

    # Class reduction along the lane axis (XLU), then -log (EUP).
    s = jnp.sum(w * x, axis=1, keepdims=True) + epsilon     # (TB, 1)
    neglog = -jnp.log(s)

    def _emit(val):
        # Lane-dense, (8,128)-aligned unmasked store of this tile's partial sum.
        out_ref[...] = jnp.broadcast_to(val, out_ref.shape)

    if has_partial:
        last = pl.num_programs(0) - 1

        @pl.when(i != last)
        def _():
            _emit(jnp.sum(neglog))

        @pl.when(i == last)   # mask only on the (statically) partial last tile
        def _():
            row = i * block_b + jax.lax.broadcasted_iota(
                jnp.int32, neglog.shape, 0)
            _emit(jnp.sum(jnp.where(row < batch, neglog, 0.0)))
    else:
        _emit(jnp.sum(neglog))


def sim_loss(x: jnp.ndarray, y: jnp.ndarray, *,
             reduction_factor: float, epsilon: float = 1e-8,
             use_exp_for_w: bool = True) -> jnp.ndarray:
    """Pallas SimLoss forward. x: (B, C) probabilities, y: (B,) int labels."""
    B, C = x.shape
    assert 0.0 <= reduction_factor < 1.0

    # VMEM-aware tile sizing: query the chip (64 MiB on v7x, 128 MiB on
    # v5e/v6e); scoped limit = half of capacity (<= 96 MiB); keep the
    # double-buffered input tiles within ~75% of that limit.
    try:
        vmem_cap = int(pltpu.get_tpu_info().vmem_capacity_bytes)
    except Exception:
        vmem_cap = 64 * 1024 * 1024            # conservative (v7x per-core)
    vmem_limit = min(vmem_cap // 2, 96 * 1024 * 1024)

    num_buffers = 2                            # default double-buffering
    bytes_per_row = C * x.dtype.itemsize + 4   # one x row (native dtype) + int32 label
    tb_budget = int(vmem_limit * 0.75) // (num_buffers * bytes_per_row)
    tb = (tb_budget // 128) * 128
    if tb < 8:
        tb = max(8, (tb_budget // 8) * 8)      # very large C fallback
    TB = max(8, min(tb, _round_up(B, 8)))      # don't allocate past the batch
    grid_n = pl.cdiv(B, TB)
    has_partial = (B % TB) != 0

    y2 = y.astype(jnp.int32).reshape(B, 1)     # labels as a (B, 1) column

    kernel = functools.partial(
        _simloss_kernel,
        epsilon=float(epsilon),
        r=float(reduction_factor),
        log_r=(math.log(reduction_factor) if reduction_factor > 0.0 else 0.0),
        r_is_zero=(reduction_factor == 0.0),
        use_exp_for_w=use_exp_for_w,
        num_classes=C,
        batch=B,
        block_b=TB,
        has_partial=has_partial,
    )

    out = pl.pallas_call(
        kernel,
        out_shape=jax.ShapeDtypeStruct((grid_n, 8, 128), jnp.float32),
        grid_spec=pltpu.PrefetchScalarGridSpec(
            num_scalar_prefetch=0,
            grid=(grid_n,),
            in_specs=[
                pl.BlockSpec((TB, C), lambda i: (i, 0)),   # x tile, native layout
                pl.BlockSpec((TB, 1), lambda i: (i, 0)),   # labels tile
            ],
            out_specs=pl.BlockSpec((1, 8, 128), lambda i: (i, 0, 0)),
        ),
        compiler_params=pltpu.CompilerParams(
            dimension_semantics=("parallel",),             # per-tile partials -> megacore OK
            vmem_limit_bytes=vmem_limit,
        ),
        cost_estimate=pl.CostEstimate(
            flops=8 * B * C,
            transcendentals=B * C + B,
            bytes_accessed=x.size * x.dtype.itemsize + B * 4 + grid_n * 8 * 128 * 4,
        ),
    )(x, y2)

    partials = out[:, 0, 0]                    # one partial sum per batch tile
    return jnp.sum(partials) * jnp.float32(1.0 / B)


def generate_w(number_of_classes: int, reduction_factor: float) -> jnp.ndarray:
    """W[j, i] = r ** |i - j| (matches the PyTorch __generate_w)."""
    i = jnp.arange(number_of_classes, dtype=jnp.float32)[None, :]
    j = jnp.arange(number_of_classes, dtype=jnp.float32)[:, None]
    return jnp.float32(reduction_factor) ** jnp.abs(i - j)


def sim_loss_ref(x, y, W, epsilon=1e-8):
    """Pure-JAX reference (mirrors the PyTorch forward)."""
    w = W[y, :]
    return jnp.mean(-jnp.log(jnp.sum(w * x.astype(jnp.float32), axis=1) + epsilon))


if __name__ == "__main__":
    number_of_classes = 16
    reduction_factor = 0.5
    batch = 8
    epsilon = 1e-8

    key = jax.random.PRNGKey(0)
    kx, ky = jax.random.split(key)

    # x: softmax-like probabilities per example, shape (B, C)
    logits = jax.random.normal(kx, (batch, number_of_classes), dtype=jnp.float32)
    x = jax.nn.softmax(logits, axis=1)
    # y: integer class labels, shape (B,)
    y = jax.random.randint(ky, (batch,), 0, number_of_classes, dtype=jnp.int32)

    loss = sim_loss(x, y, reduction_factor=reduction_factor, epsilon=epsilon)
    loss = jax.block_until_ready(loss)

    W = generate_w(number_of_classes, reduction_factor)
    ref = sim_loss_ref(x, y, W, epsilon=epsilon)

    assert jnp.isfinite(loss), loss
    assert jnp.allclose(loss, ref, rtol=1e-4, atol=1e-5), (loss, ref)

    print("KERNEL_OK")
</pallas_src>

<mosaic_0001>
module attributes {stable_mosaic.version = 11 : i64} {
  func.func @_simloss_kernel(%arg0: i32, %arg1: memref<8x16xf32, #tpu.memory_space<vmem>>, %arg2: memref<8x1xi32, #tpu.memory_space<vmem>>, %arg3: memref<1x8x128xf32, #tpu.memory_space<vmem>>) attributes {dimension_semantics = [#tpu.dimension_semantics<parallel>], iteration_bounds = array<i64: 1>, scalar_prefetch = 0 : i64, scratch_operands = 0 : i64, tpu.core_type = #tpu.core_type<tc>, window_params = [{transform_indices = @transform_0, window_bounds = array<i64: 8, 16>}, {transform_indices = @transform_1, window_bounds = array<i64: 8, 1>}, {transform_indices = @transform_2, window_bounds = array<i64: 1, 8, 128>}]} {
    %c0 = arith.constant 0 : index
    %c0_0 = arith.constant 0 : index
    %0 = vector.load %arg1[%c0, %c0_0] : memref<8x16xf32, #tpu.memory_space<vmem>>, vector<8x16xf32>
    %c0_1 = arith.constant 0 : index
    %c0_2 = arith.constant 0 : index
    %1 = vector.load %arg2[%c0_1, %c0_2] : memref<8x1xi32, #tpu.memory_space<vmem>>, vector<8x1xi32>
    %2 = tpu.iota {dimensions = array<i32: 1>} : vector<8x16xi32>
    %3 = vector.broadcast %1 : vector<8x1xi32> to vector<8x16xi32>
    %4 = arith.subi %2, %3 : vector<8x16xi32>
    %5 = math.absi %4 : vector<8x16xi32>
    %6 = arith.sitofp %5 : vector<8x16xi32> to vector<8x16xf32>
    %cst = arith.constant -0.693147182 : f32
    %7 = vector.broadcast %cst : f32 to vector<8x16xf32>
    %8 = arith.mulf %6, %7 : vector<8x16xf32>
    %9 = math.exp %8 : vector<8x16xf32>
    %10 = arith.mulf %9, %0 : vector<8x16xf32>
    %cst_3 = arith.constant dense<0.000000e+00> : vector<8xf32>
    %11 = vector.multi_reduction <add>, %10, %cst_3 [1] : vector<8x16xf32> to vector<8xf32>
    %12 = vector.shape_cast %11 : vector<8xf32> to vector<8x1xf32>
    %cst_4 = arith.constant 9.99999993E-9 : f32
    %13 = vector.broadcast %cst_4 : f32 to vector<8x1xf32>
    %14 = arith.addf %12, %13 : vector<8x1xf32>
    %15 = math.log %14 : vector<8x1xf32>
    %cst_5 = arith.constant 0.000000e+00 : f32
    %16 = vector.broadcast %cst_5 : f32 to vector<8x1xf32>
    %17 = arith.subf %16, %15 : vector<8x1xf32>
    %18 = vector.shape_cast %17 : vector<8x1xf32> to vector<1x8x1xf32>
    %cst_6 = arith.constant dense<0.000000e+00> : vector<1xf32>
    %19 = vector.multi_reduction <add>, %18, %cst_6 [1, 2] : vector<1x8x1xf32> to vector<1xf32>
    %20 = vector.shape_cast %19 : vector<1xf32> to vector<1x1x1xf32>
    %21 = vector.extract %20[0, 0, 0] : f32 from vector<1x1x1xf32>
    %22 = vector.broadcast %21 : f32 to vector<1x8x128xf32>
    %c0_7 = arith.constant 0 : index
    %c0_8 = arith.constant 0 : index
    %c0_9 = arith.constant 0 : index
    %23 = vector.load %arg3[%c0_7, %c0_8, %c0_9] : memref<1x8x128xf32, #tpu.memory_space<vmem>>, vector<1x8x128xf32>
    tpu.vector_store %arg3[%c0_7, %c0_8, %c0_9], %22 {strides = array<i32>} : memref<1x8x128xf32, #tpu.memory_space<vmem>>, vector<1x8x128xf32>,
    return
  }
  func.func @transform_0(%arg0: i32) -> (i32, i32) {
    %c0_i32 = arith.constant 0 : i32
    %c0_i32_0 = arith.constant 0 : i32
    return %arg0, %c0_i32 : i32, i32
  }
  func.func @transform_1(%arg0: i32) -> (i32, i32) {
    %c0_i32 = arith.constant 0 : i32
    %c0_i32_0 = arith.constant 0 : i32
    return %arg0, %c0_i32 : i32, i32
  }
  func.func @transform_2(%arg0: i32) -> (i32, i32, i32) {
    %c0_i32 = arith.constant 0 : i32
    %c0_i32_0 = arith.constant 0 : i32
    %c0_i32_1 = arith.constant 0 : i32
    return %arg0, %c0_i32, %c0_i32_0 : i32, i32, i32
  }
}

</mosaic_0001>

<llo_original>
// kernel: tpu_custom_call.1
$region0: #{tpu_custom_call.1}
  #allocation0 [shape = 'u32[]', space=smem, size = 0x4, offset = 0x4, fixed_abs, tag = 'smem constant byte address 0x4 - core index']
  #allocation1 [shape = 'u32[144,128]{1,0:T(1,128)}', space=vmem, size = 0x12000, scoped, tag = 'internal scratch']
  %s0 = inlined_call_operand.vmem [shape: f32[8,16], index: 0, kind: input, shape index: {}]
  %s1 = inlined_call_operand.vmem [shape: s32[8,1], index: 1, kind: input, shape index: {}]
  %s2 = inlined_call_operand.hbm [shape: f32[1,8,128], index: 2, kind: output, shape index: {}]
  %s3 = sld [smem:[#allocation0]]
  $region18: #{tpu_custom_call.1} parent=0
    _
  %s5 = ssub.s32 1, %s3
  %s6 = scalar_select 0, %s5, %s3
  $region1: #{tpu_custom_call.1} parent=0
    #allocation2 [shape = 'u8[4096]{0}', space=vmem, size = 0x1000, scoped, tag = 'output window, operand 0, single buffered']
    #allocation3 [shape = 's32[1]{0}', space=sflag, size = 0x4, scoped, tag = 'scoped memory for tpu_custom_call.1']
    %7 = vsyncpa [#allocation3], 0
    // Predicated region
    $region2: #{tpu_custom_call.1} parent=1 // pred_check
      _
    $region3: #{tpu_custom_call.1} parent=1 // pred_check_branch
      %9 = sbr.rel (0) target = $region5
    $region4: #{tpu_custom_call.1} parent=1 // pred_region
      _
    $region5: #{tpu_custom_call.1} parent=1 // pred_fallthru
      _
    // Predicated region
    $region6: #{tpu_custom_call.1} parent=1 // pred_check
      _
    $region7: #{tpu_custom_call.1} parent=1 // pred_check_branch
      %11 = sbr.rel (0) target = $region9
    $region8: #{tpu_custom_call.1} parent=1 // pred_region
      _
    $region9: #{tpu_custom_call.1} parent=1 // pred_fallthru
      _
    %v12 = vld [vmem:[%s0] sm:$0xff]
    %v13 = vld [vmem:[%s1] sm:$0xff]
    %v14 = vlaneseq
    %v15 = vand.u32 %v14, 127
    %16 = vset.pattern.permute.xlu0 0
    %17 = vperm.xlu0 %16, %v13
    %v18 = vpop.permute.xlu0 %17
    %v19 = vsub.s32 %v15, %v18
    %vm20 = vcmp.lt.s32.totalorder %v19, 0
    %v21 = vsub.s32 0, %v19
    %v22 = vsel %vm20, %v21, %v19
    %v23 = vcvt.s32.f32 %v22
    %v24 = vmul.f32 %v23, -0.6931472
    %v25 = vmul.f32 %v24, 1.442695
    %v26 = vpow.pop %v25
    %v27 = vmul.f32 %v26, %v12
    %vm28 = vcmask 130048
    %v29 = vsel %vm28, %v27, 0.0
    %30 = vadd.xlane.f32.xlu0 %v29
    %v31 = vpop.xlane.xlu0 %30
    %v32 = vadd.f32 %v31, 1e-08
    %v33 = vlog2.pop %v32
    %v34 = vmul.f32 %v33, 0.6931472
    %v35 = vsub.f32 0.0, %v34
    %vm36 = vcmask 7168
    %v37 = vsel %vm36, %v35, 0.0
    %38 = vadd.xlane.f32.xlu0 %v37
    %v39 = vpop.xlane.xlu0 %38
    %v40 = vrot.slane %v39, 4
    %v41 = vadd.f32 %v39, %v40
    %v42 = vrot.slane %v41, 2
    %v43 = vadd.f32 %v41, %v42
    %v44 = vrot.slane %v43, 1
    %v45 = vadd.f32 %v43, %v44
    %s46 = vtos %v45
    %v47 = vstv %s46
    %48 = vst [vmem:[#allocation2] sm:$0xff] %v47
    // Predicated region
    $region10: #{tpu_custom_call.1} parent=1 // pred_check
      _
    $region11: #{tpu_custom_call.1} parent=1 // pred_check_branch
      %50 = sbr.rel (0) target = $region13
    $region12: #{tpu_custom_call.1} parent=1 // pred_region
      %s52 = ssub.s32 128, 128
      %53 = vsyncadd [#allocation3], %s52
      %s55 = sshll.u32 [#allocation2], 4
      %s56 = int_to_ptr.vmem [resolvable:$true] %s55
      %58 = dma.vmem_to_hbm [thread:$0]  %s56, 128, %s2, [#allocation3]
    $region13: #{tpu_custom_call.1} parent=1 // pred_fallthru
      _
    // Predicated region
    $region14: #{tpu_custom_call.1} parent=1 // pred_check
      _
    $region15: #{tpu_custom_call.1} parent=1 // pred_check_branch
      %60 = sbr.rel (0) target = $region17
    $region16: #{tpu_custom_call.1} parent=1 // pred_region
      %61 = dma.done [#allocation3], 128
    $region17: #{tpu_custom_call.1} parent=1 // pred_fallthru
      _
    %62 = vsyncpa [#allocation3], 1

</llo_original>
